<compile_context>
chip_gen: v7x
topology: tpu7x:2x2x1
jax: 0.10.0
libtpu: 0.0.40
codegen_flags: <defaults>
</compile_context>

<pallas_src>
import jax
import jax.numpy as jnp
from jax.experimental import pallas as pl
from jax.experimental.pallas import tpu as pltpu

LANE = 128


def _round_up(v, m):
    return (v + m - 1) // m * m


def _choose_tile_b(B):
    """Batch tile: no padding waste for tiny batches; >=2 tiles for training-sized
    batches (so the two v7x TensorCores both get work); 256 rows for huge batches."""
    b8 = _round_up(max(B, 1), 8)
    if b8 <= 128:
        return b8
    if b8 <= 1024:
        return 128
    return 256


# ----------------------------------------------------------------------------
# Shared GRU-step math (values, not refs).  Matmuls in bf16 -> f32 accumulate,
# epilogue in f32 (v5e VPU/EUP have no bf16).
# ----------------------------------------------------------------------------
def _gru_step(x, h_in, w1, b1, wx, wh, bx, bh, w2, b2):
    Hp = h_in.shape[-1]
    md = w1.dtype                                     # matmul operand dtype (bf16)

    x1 = jnp.dot(x.astype(md), w1, preferred_element_type=jnp.float32) + b1
    x1 = jnp.maximum(x1, 0.0)

    gx = jnp.dot(x1.astype(md), wx, preferred_element_type=jnp.float32) + bx
    gh = jnp.dot(h_in.astype(md), wh, preferred_element_type=jnp.float32) + bh

    # Whole-vreg (128-lane aligned) gate groups: [r | z | n], torch.GRUCell order.
    r = jax.nn.sigmoid(gx[:, 0 * Hp:1 * Hp] + gh[:, 0 * Hp:1 * Hp])
    z = jax.nn.sigmoid(gx[:, 1 * Hp:2 * Hp] + gh[:, 1 * Hp:2 * Hp])
    n = jnp.tanh(gx[:, 2 * Hp:3 * Hp] + r * gh[:, 2 * Hp:3 * Hp])
    h_new = (1.0 - z) * n + z * h_in

    q = jnp.dot(h_new.astype(md), w2, preferred_element_type=jnp.float32) + b2
    return q, h_new


# ----------------------------------------------------------------------------
# Kernels
# ----------------------------------------------------------------------------
def _rnn_step_kernel(x_ref, h_ref, w1_ref, b1_ref, wx_ref, wh_ref, bx_ref, bh_ref,
                     w2_ref, b2_ref, q_ref, hout_ref):
    q, h_new = _gru_step(x_ref[...], h_ref[...],
                         w1_ref[...], b1_ref[...],
                         wx_ref[...], wh_ref[...], bx_ref[...], bh_ref[...],
                         w2_ref[...], b2_ref[...])
    hout_ref[...] = h_new
    q_ref[...] = q


def _rnn_rollout_kernel(x_ref, h0_ref, w1_ref, b1_ref, wx_ref, wh_ref, bx_ref, bh_ref,
                        w2_ref, b2_ref, q_ref, hlast_ref, h_sc):
    t = pl.program_id(1)

    @pl.when(t == 0)
    def _():                                          # fresh batch tile: load h0
        h_sc[...] = h0_ref[...]

    q, h_new = _gru_step(x_ref[0], h_sc[...],
                         w1_ref[...], b1_ref[...],
                         wx_ref[...], wh_ref[...], bx_ref[...], bh_ref[...],
                         w2_ref[...], b2_ref[...])
    h_sc[...] = h_new
    q_ref[0] = q

    @pl.when(t == pl.num_programs(1) - 1)
    def _():
        hlast_ref[...] = h_new


# ----------------------------------------------------------------------------
# Wrappers
# ----------------------------------------------------------------------------
def rnn_model_forward(x, hidden_state, kparams, *, tile_b=None):
    """Single-step RNNModel.forward:  q, h = fc2(GRU(relu(fc1(x)), h)), GRU(...)."""
    H, A = kparams["H"], kparams["A"]
    Hp = kparams["w_h"].shape[0]
    Ap = kparams["fc2_w"].shape[1]

    x = x.astype(jnp.float32)
    B, obs = x.shape
    h_in = jnp.reshape(hidden_state, (-1, H)).astype(jnp.float32)

    if tile_b is None:
        tile_b = _choose_tile_b(B)
    Bp = _round_up(max(B, 1), tile_b)

    # Pad only the batch dim of x (obs stays unpadded); pad h to (Bp, Hp).
    x_p = jnp.pad(x, ((0, Bp - B), (0, 0))) if Bp != B else x
    h_p = jnp.pad(h_in, ((0, Bp - B), (0, Hp - H)))

    nb = Bp // tile_b
    row = lambda i: (i, 0)        # batch-tiled operands
    const = lambda i: (0, 0)      # weights: constant block index -> VMEM-resident

    q_p, h_out_p = pl.pallas_call(
        _rnn_step_kernel,
        out_shape=(
            jax.ShapeDtypeStruct((Bp, Ap), jnp.float32),
            jax.ShapeDtypeStruct((Bp, Hp), jnp.float32),
        ),
        grid=(nb,),
        in_specs=[
            pl.BlockSpec((tile_b, obs), row),          # x   (f32, unpadded K)
            pl.BlockSpec((tile_b, Hp), row),           # h_in (f32)
            pl.BlockSpec((obs, Hp), const),            # fc1_w (bf16)
            pl.BlockSpec((1, Hp), const),              # fc1_b (f32)
            pl.BlockSpec((Hp, 3 * Hp), const),         # W_x   (bf16)
            pl.BlockSpec((Hp, 3 * Hp), const),         # W_h   (bf16)
            pl.BlockSpec((1, 3 * Hp), const),          # b_ih  (f32)
            pl.BlockSpec((1, 3 * Hp), const),          # b_hh  (f32)
            pl.BlockSpec((Hp, Ap), const),             # fc2_w (bf16)
            pl.BlockSpec((1, Ap), const),              # fc2_b (f32)
        ],
        out_specs=(
            pl.BlockSpec((tile_b, Ap), row),           # q (lane-dense)
            pl.BlockSpec((tile_b, Hp), row),           # h_out
        ),
        input_output_aliases={1: 1},                   # h_out reuses h_in's buffer
        compiler_params=pltpu.CompilerParams(
            dimension_semantics=("parallel",)),        # megacore split on v7x
    )(
        x_p, h_p,
        kparams["fc1_w"], kparams["fc1_b"],
        kparams["w_x"], kparams["w_h"], kparams["b_x"], kparams["b_h"],
        kparams["fc2_w"], kparams["fc2_b"],
    )

    return q_p[:B, :A], h_out_p[:B, :H]


def rnn_model_rollout(xs, hidden_state, kparams, *, tile_b=None):
    """Fused T-step rollout of RNNModel.forward over xs[t] (shape (T, B, obs)).
    grid=(batch_tiles, T); h carried in VMEM scratch -> weights DMAed once per tile."""
    H, A = kparams["H"], kparams["A"]
    Hp = kparams["w_h"].shape[0]
    Ap = kparams["fc2_w"].shape[1]

    xs = xs.astype(jnp.float32)
    T, B, obs = xs.shape
    h0 = jnp.reshape(hidden_state, (-1, H)).astype(jnp.float32)

    if tile_b is None:
        tile_b = _choose_tile_b(B)
    Bp = _round_up(max(B, 1), tile_b)

    xs_p = jnp.pad(xs, ((0, 0), (0, Bp - B), (0, 0))) if Bp != B else xs
    h0_p = jnp.pad(h0, ((0, Bp - B), (0, Hp - H)))

    nb = Bp // tile_b
    const = lambda i, t: (0, 0)

    qs_p, h_last_p = pl.pallas_call(
        _rnn_rollout_kernel,
        out_shape=(
            jax.ShapeDtypeStruct((T, Bp, Ap), jnp.float32),
            jax.ShapeDtypeStruct((Bp, Hp), jnp.float32),
        ),
        grid=(nb, T),
        in_specs=[
            pl.BlockSpec((1, tile_b, obs), lambda i, t: (t, i, 0)),   # xs[t]
            pl.BlockSpec((tile_b, Hp), lambda i, t: (i, 0)),          # h0
            pl.BlockSpec((obs, Hp), const),
            pl.BlockSpec((1, Hp), const),
            pl.BlockSpec((Hp, 3 * Hp), const),
            pl.BlockSpec((Hp, 3 * Hp), const),
            pl.BlockSpec((1, 3 * Hp), const),
            pl.BlockSpec((1, 3 * Hp), const),
            pl.BlockSpec((Hp, Ap), const),
            pl.BlockSpec((1, Ap), const),
        ],
        out_specs=(
            pl.BlockSpec((1, tile_b, Ap), lambda i, t: (t, i, 0)),    # q per step
            pl.BlockSpec((tile_b, Hp), lambda i, t: (i, 0)),          # final h
        ),
        scratch_shapes=[pltpu.VMEM((tile_b, Hp), jnp.float32)],       # carried h
        compiler_params=pltpu.CompilerParams(
            dimension_semantics=("parallel", "arbitrary")),
    )(
        xs_p, h0_p,
        kparams["fc1_w"], kparams["fc1_b"],
        kparams["w_x"], kparams["w_h"], kparams["b_x"], kparams["b_h"],
        kparams["fc2_w"], kparams["fc2_b"],
    )

    return qs_p[:, :B, :A], h_last_p[:B, :H]


# ----------------------------------------------------------------------------
# Parameter construction (PyTorch-convention raw params -> packed kernel params)
# ----------------------------------------------------------------------------
def init_raw_params(key, obs_size, hidden_dim, n_actions):
    """Raw parameters in PyTorch (out, in) convention, uniform init like torch."""
    ks = jax.random.split(key, 8)

    def u(k, shape, fan_in):
        bound = 1.0 / jnp.sqrt(jnp.float32(fan_in))
        return jax.random.uniform(k, shape, jnp.float32, -bound, bound)

    H = hidden_dim
    return {
        "fc1_w": u(ks[0], (H, obs_size), obs_size),       # (out, in)
        "fc1_b": u(ks[1], (H,), obs_size),
        "w_ih": u(ks[2], (3 * H, H), H),                  # gate order [r|z|n]
        "w_hh": u(ks[3], (3 * H, H), H),
        "b_ih": u(ks[4], (3 * H,), H),
        "b_hh": u(ks[5], (3 * H,), H),
        "fc2_w": u(ks[6], (n_actions, H), H),
        "fc2_b": u(ks[7], (n_actions,), H),
    }


def pack_params(raw, obs_size, hidden_dim, n_actions, *, matmul_dtype=jnp.bfloat16):
    """Transpose to (in, out), pad hidden/action lanes to 128, split gate weights
    into W_x / W_h with column groups [r|z|n]; weights in bf16, biases in f32."""
    H = hidden_dim
    Hp = _round_up(H, LANE)
    Ap = _round_up(n_actions, LANE)

    def pad2(a, rows, cols, dtype):
        out = jnp.zeros((rows, cols), jnp.float32)
        out = out.at[:a.shape[0], :a.shape[1]].set(a)
        return out.astype(dtype)

    fc1_w = pad2(raw["fc1_w"].T, obs_size, Hp, matmul_dtype)     # (obs, Hp), no K pad
    fc1_b = pad2(raw["fc1_b"][None, :], 1, Hp, jnp.float32)

    def pack_gate_w(w):                                          # (3H, H) torch layout
        wg = jnp.zeros((Hp, 3 * Hp), jnp.float32)
        for g in range(3):
            wg = wg.at[:H, g * Hp:g * Hp + H].set(w[g * H:(g + 1) * H, :].T)
        return wg.astype(matmul_dtype)

    def pack_gate_b(b):
        bg = jnp.zeros((1, 3 * Hp), jnp.float32)
        for g in range(3):
            bg = bg.at[0, g * Hp:g * Hp + H].set(b[g * H:(g + 1) * H])
        return bg

    return {
        "fc1_w": fc1_w, "fc1_b": fc1_b,
        "w_x": pack_gate_w(raw["w_ih"]), "w_h": pack_gate_w(raw["w_hh"]),
        "b_x": pack_gate_b(raw["b_ih"]), "b_h": pack_gate_b(raw["b_hh"]),
        "fc2_w": pad2(raw["fc2_w"].T, Hp, Ap, matmul_dtype),
        "fc2_b": pad2(raw["fc2_b"][None, :], 1, Ap, jnp.float32),
        "H": H, "A": n_actions, "obs": obs_size,
    }


# ----------------------------------------------------------------------------
# Pure-JAX reference (mirrors torch.nn.GRUCell math).  matmul_dtype=bf16 mirrors
# the kernel's MXU operand rounding; f32 is the exact torch-equivalent math.
# ----------------------------------------------------------------------------
def reference_forward(x, h_in, raw, matmul_dtype=jnp.float32):
    H = h_in.shape[1]
    md = matmul_dtype
    dot = lambda a, b: jnp.dot(a.astype(md), b.astype(md),
                               preferred_element_type=jnp.float32)
    x1 = jnp.maximum(dot(x, raw["fc1_w"].T) + raw["fc1_b"], 0.0)
    gi = dot(x1, raw["w_ih"].T) + raw["b_ih"]
    gh = dot(h_in, raw["w_hh"].T) + raw["b_hh"]
    i_r, i_z, i_n = gi[:, :H], gi[:, H:2 * H], gi[:, 2 * H:]
    h_r, h_z, h_n = gh[:, :H], gh[:, H:2 * H], gh[:, 2 * H:]
    r = jax.nn.sigmoid(i_r + h_r)
    z = jax.nn.sigmoid(i_z + h_z)
    n = jnp.tanh(i_n + r * h_n)
    h = (1.0 - z) * n + z * h_in
    q = dot(h, raw["fc2_w"].T) + raw["fc2_b"]
    return q, h


def _check(name, got, want, tol):
    err = float(jnp.max(jnp.abs(got - want)))
    assert err < tol, f"{name} mismatch: max abs err {err} (tol {tol})"


if __name__ == "__main__":
    obs_size, hidden_dim, n_actions = 16, 32, 8
    batch, T = 4, 8

    key = jax.random.PRNGKey(0)
    k_params, k_x, k_xs = jax.random.split(key, 3)

    raw = init_raw_params(k_params, obs_size, hidden_dim, n_actions)
    kparams = pack_params(raw, obs_size, hidden_dim, n_actions)

    x = jax.random.normal(k_x, (batch, obs_size), jnp.float32)
    hidden_state = jnp.zeros((batch, 1, hidden_dim), jnp.float32)   # init_hidden()
    h0 = hidden_state.reshape(-1, hidden_dim)

    # --- single step (matches RNNModel.forward) ---
    step_fn = jax.jit(lambda xx, hh: rnn_model_forward(xx, hh, kparams))
    q, h = jax.block_until_ready(step_fn(x, hidden_state))
    assert q.shape == (batch, n_actions) and h.shape == (batch, hidden_dim)

    q_bf, h_bf = reference_forward(x, h0, raw, matmul_dtype=jnp.bfloat16)
    q_32, h_32 = reference_forward(x, h0, raw, matmul_dtype=jnp.float32)
    _check("q vs bf16-matmul ref", q, q_bf, 5e-3)
    _check("h vs bf16-matmul ref", h, h_bf, 5e-3)
    _check("q vs f32 ref (bf16 drift bound)", q, q_32, 1e-1)
    _check("h vs f32 ref (bf16 drift bound)", h, h_32, 1e-1)

    # --- fused T-step rollout (implements the previous TODO) ---
    xs = jax.random.normal(k_xs, (T, batch, obs_size), jnp.float32)
    roll_fn = jax.jit(lambda xx, hh: rnn_model_rollout(xx, hh, kparams))
    qs, h_last = jax.block_until_ready(roll_fn(xs, hidden_state))
    assert qs.shape == (T, batch, n_actions) and h_last.shape == (batch, hidden_dim)

    def ref_roll(md):
        hh, qs_list = h0, []
        for t in range(T):
            qt, hh = reference_forward(xs[t], hh, raw, matmul_dtype=md)
            qs_list.append(qt)
        return jnp.stack(qs_list), hh

    qs_bf, hl_bf = ref_roll(jnp.bfloat16)
    qs_32, hl_32 = ref_roll(jnp.float32)
    _check("rollout q vs bf16-matmul ref", qs, qs_bf, 1e-2)
    _check("rollout h vs bf16-matmul ref", h_last, hl_bf, 1e-2)
    _check("rollout q vs f32 ref (bf16 drift bound)", qs, qs_32, 2.5e-1)
    _check("rollout h vs f32 ref (bf16 drift bound)", h_last, hl_32, 2.5e-1)

    print("KERNEL_OK")
</pallas_src>

<mosaic_0001>
module attributes {stable_mosaic.version = 11 : i64} {
  func.func @_rnn_step_kernel(%arg0: i32, %arg1: memref<8x16xf32, #tpu.memory_space<vmem>>, %arg2: memref<8x128xf32, #tpu.memory_space<vmem>>, %arg3: memref<16x128xbf16, #tpu.memory_space<vmem>>, %arg4: memref<1x128xf32, #tpu.memory_space<vmem>>, %arg5: memref<128x384xbf16, #tpu.memory_space<vmem>>, %arg6: memref<128x384xbf16, #tpu.memory_space<vmem>>, %arg7: memref<1x384xf32, #tpu.memory_space<vmem>>, %arg8: memref<1x384xf32, #tpu.memory_space<vmem>>, %arg9: memref<128x128xbf16, #tpu.memory_space<vmem>>, %arg10: memref<1x128xf32, #tpu.memory_space<vmem>>, %arg11: memref<8x128xf32, #tpu.memory_space<vmem>>, %arg12: memref<8x128xf32, #tpu.memory_space<vmem>>) attributes {dimension_semantics = [#tpu.dimension_semantics<parallel>], iteration_bounds = array<i64: 1>, scalar_prefetch = 0 : i64, scratch_operands = 0 : i64, tpu.core_type = #tpu.core_type<tc>, window_params = [{transform_indices = @transform_0, window_bounds = array<i64: 8, 16>}, {transform_indices = @transform_1, window_bounds = array<i64: 8, 128>}, {pipeline_mode = #tpu.pipeline_mode<synchronous>, transform_indices = @transform_2, window_bounds = array<i64: 16, 128>}, {pipeline_mode = #tpu.pipeline_mode<synchronous>, transform_indices = @transform_3, window_bounds = array<i64: 1, 128>}, {pipeline_mode = #tpu.pipeline_mode<synchronous>, transform_indices = @transform_4, window_bounds = array<i64: 128, 384>}, {pipeline_mode = #tpu.pipeline_mode<synchronous>, transform_indices = @transform_5, window_bounds = array<i64: 128, 384>}, {pipeline_mode = #tpu.pipeline_mode<synchronous>, transform_indices = @transform_6, window_bounds = array<i64: 1, 384>}, {pipeline_mode = #tpu.pipeline_mode<synchronous>, transform_indices = @transform_7, window_bounds = array<i64: 1, 384>}, {pipeline_mode = #tpu.pipeline_mode<synchronous>, transform_indices = @transform_8, window_bounds = array<i64: 128, 128>}, {pipeline_mode = #tpu.pipeline_mode<synchronous>, transform_indices = @transform_9, window_bounds = array<i64: 1, 128>}, {transform_indices = @transform_10, window_bounds = array<i64: 8, 128>}, {transform_indices = @transform_11, window_bounds = array<i64: 8, 128>}]} {
    %c0 = arith.constant 0 : index
    %c0_0 = arith.constant 0 : index
    %0 = vector.load %arg1[%c0, %c0_0] : memref<8x16xf32, #tpu.memory_space<vmem>>, vector<8x16xf32>
    %c0_1 = arith.constant 0 : index
    %c0_2 = arith.constant 0 : index
    %1 = vector.load %arg2[%c0_1, %c0_2] : memref<8x128xf32, #tpu.memory_space<vmem>>, vector<8x128xf32>
    %c0_3 = arith.constant 0 : index
    %c0_4 = arith.constant 0 : index
    %2 = vector.load %arg3[%c0_3, %c0_4] : memref<16x128xbf16, #tpu.memory_space<vmem>>, vector<16x128xbf16>
    %c0_5 = arith.constant 0 : index
    %c0_6 = arith.constant 0 : index
    %3 = vector.load %arg4[%c0_5, %c0_6] : memref<1x128xf32, #tpu.memory_space<vmem>>, vector<1x128xf32>
    %c0_7 = arith.constant 0 : index
    %c0_8 = arith.constant 0 : index
    %4 = vector.load %arg5[%c0_7, %c0_8] : memref<128x384xbf16, #tpu.memory_space<vmem>>, vector<128x384xbf16>
    %c0_9 = arith.constant 0 : index
    %c0_10 = arith.constant 0 : index
    %5 = vector.load %arg6[%c0_9, %c0_10] : memref<128x384xbf16, #tpu.memory_space<vmem>>, vector<128x384xbf16>
    %c0_11 = arith.constant 0 : index
    %c0_12 = arith.constant 0 : index
    %6 = vector.load %arg7[%c0_11, %c0_12] : memref<1x384xf32, #tpu.memory_space<vmem>>, vector<1x384xf32>
    %c0_13 = arith.constant 0 : index
    %c0_14 = arith.constant 0 : index
    %7 = vector.load %arg8[%c0_13, %c0_14] : memref<1x384xf32, #tpu.memory_space<vmem>>, vector<1x384xf32>
    %c0_15 = arith.constant 0 : index
    %c0_16 = arith.constant 0 : index
    %8 = vector.load %arg9[%c0_15, %c0_16] : memref<128x128xbf16, #tpu.memory_space<vmem>>, vector<128x128xbf16>
    %c0_17 = arith.constant 0 : index
    %c0_18 = arith.constant 0 : index
    %9 = vector.load %arg10[%c0_17, %c0_18] : memref<1x128xf32, #tpu.memory_space<vmem>>, vector<1x128xf32>
    %10 = arith.truncf %0 : vector<8x16xf32> to vector<8x16xbf16>
    %cst = arith.constant dense<0.000000e+00> : vector<8x128xf32>
    %11 = tpu.matmul %10, %2, %cst {dimension_numbers = #tpu.dot_dimension_numbers<[1], [0], [0], [1], [0, 0, 1, 1], [], []>} : vector<8x16xbf16>, vector<16x128xbf16>, vector<8x128xf32> -> vector<8x128xf32>
    %12 = vector.broadcast %3 : vector<1x128xf32> to vector<8x128xf32>
    %13 = arith.addf %11, %12 : vector<8x128xf32>
    %cst_19 = arith.constant 0.000000e+00 : f32
    %14 = vector.broadcast %cst_19 : f32 to vector<8x128xf32>
    %15 = arith.maximumf %13, %14 : vector<8x128xf32>
    %16 = arith.truncf %15 : vector<8x128xf32> to vector<8x128xbf16>
    %cst_20 = arith.constant dense<0.000000e+00> : vector<8x384xf32>
    %17 = tpu.matmul %16, %4, %cst_20 {dimension_numbers = #tpu.dot_dimension_numbers<[1], [0], [0], [1], [0, 0, 1, 1], [], []>} : vector<8x128xbf16>, vector<128x384xbf16>, vector<8x384xf32> -> vector<8x384xf32>
    %18 = vector.broadcast %6 : vector<1x384xf32> to vector<8x384xf32>
    %19 = arith.addf %17, %18 : vector<8x384xf32>
    %20 = arith.truncf %1 : vector<8x128xf32> to vector<8x128xbf16>
    %cst_21 = arith.constant dense<0.000000e+00> : vector<8x384xf32>
    %21 = tpu.matmul %20, %5, %cst_21 {dimension_numbers = #tpu.dot_dimension_numbers<[1], [0], [0], [1], [0, 0, 1, 1], [], []>} : vector<8x128xbf16>, vector<128x384xbf16>, vector<8x384xf32> -> vector<8x384xf32>
    %22 = vector.broadcast %7 : vector<1x384xf32> to vector<8x384xf32>
    %23 = arith.addf %21, %22 : vector<8x384xf32>
    %24 = vector.extract_strided_slice %19 {offsets = [0, 0], sizes = [8, 128], strides = [1, 1]} : vector<8x384xf32> to vector<8x128xf32>
    %25 = vector.extract_strided_slice %23 {offsets = [0, 0], sizes = [8, 128], strides = [1, 1]} : vector<8x384xf32> to vector<8x128xf32>
    %26 = arith.addf %24, %25 : vector<8x128xf32>
    %27 = arith.negf %26 : vector<8x128xf32>
    %28 = math.exp %27 : vector<8x128xf32>
    %cst_22 = arith.constant 1.000000e+00 : f32
    %29 = vector.broadcast %cst_22 : f32 to vector<8x128xf32>
    %30 = arith.addf %29, %28 : vector<8x128xf32>
    %31 = arith.divf %29, %30 : vector<8x128xf32>
    %32 = vector.extract_strided_slice %19 {offsets = [0, 128], sizes = [8, 128], strides = [1, 1]} : vector<8x384xf32> to vector<8x128xf32>
    %33 = vector.extract_strided_slice %23 {offsets = [0, 128], sizes = [8, 128], strides = [1, 1]} : vector<8x384xf32> to vector<8x128xf32>
    %34 = arith.addf %32, %33 : vector<8x128xf32>
    %35 = arith.negf %34 : vector<8x128xf32>
    %36 = math.exp %35 : vector<8x128xf32>
    %cst_23 = arith.constant 1.000000e+00 : f32
    %37 = vector.broadcast %cst_23 : f32 to vector<8x128xf32>
    %38 = arith.addf %37, %36 : vector<8x128xf32>
    %39 = arith.divf %37, %38 : vector<8x128xf32>
    %40 = vector.extract_strided_slice %19 {offsets = [0, 256], sizes = [8, 128], strides = [1, 1]} : vector<8x384xf32> to vector<8x128xf32>
    %41 = vector.extract_strided_slice %23 {offsets = [0, 256], sizes = [8, 128], strides = [1, 1]} : vector<8x384xf32> to vector<8x128xf32>
    %42 = arith.mulf %31, %41 : vector<8x128xf32>
    %43 = arith.addf %40, %42 : vector<8x128xf32>
    %44 = math.tanh %43 : vector<8x128xf32>
    %cst_24 = arith.constant 1.000000e+00 : f32
    %45 = vector.broadcast %cst_24 : f32 to vector<8x128xf32>
    %46 = arith.subf %45, %39 : vector<8x128xf32>
    %47 = arith.mulf %46, %44 : vector<8x128xf32>
    %48 = arith.mulf %39, %1 : vector<8x128xf32>
    %49 = arith.addf %47, %48 : vector<8x128xf32>
    %50 = arith.truncf %49 : vector<8x128xf32> to vector<8x128xbf16>
    %cst_25 = arith.constant dense<0.000000e+00> : vector<8x128xf32>
    %51 = tpu.matmul %50, %8, %cst_25 {dimension_numbers = #tpu.dot_dimension_numbers<[1], [0], [0], [1], [0, 0, 1, 1], [], []>} : vector<8x128xbf16>, vector<128x128xbf16>, vector<8x128xf32> -> vector<8x128xf32>
    %52 = vector.broadcast %9 : vector<1x128xf32> to vector<8x128xf32>
    %53 = arith.addf %51, %52 : vector<8x128xf32>
    %c0_26 = arith.constant 0 : index
    %c0_27 = arith.constant 0 : index
    %54 = vector.load %arg12[%c0_26, %c0_27] : memref<8x128xf32, #tpu.memory_space<vmem>>, vector<8x128xf32>
    tpu.vector_store %arg12[%c0_26, %c0_27], %49 {strides = array<i32>} : memref<8x128xf32, #tpu.memory_space<vmem>>, vector<8x128xf32>,
    %c0_28 = arith.constant 0 : index
    %c0_29 = arith.constant 0 : index
    %55 = vector.load %arg11[%c0_28, %c0_29] : memref<8x128xf32, #tpu.memory_space<vmem>>, vector<8x128xf32>
    tpu.vector_store %arg11[%c0_28, %c0_29], %53 {strides = array<i32>} : memref<8x128xf32, #tpu.memory_space<vmem>>, vector<8x128xf32>,
    return
  }
  func.func @transform_0(%arg0: i32) -> (i32, i32) {
    %c0_i32 = arith.constant 0 : i32
    %c0_i32_0 = arith.constant 0 : i32
    return %arg0, %c0_i32 : i32, i32
  }
  func.func @transform_1(%arg0: i32) -> (i32, i32) {
    %c0_i32 = arith.constant 0 : i32
    %c0_i32_0 = arith.constant 0 : i32
    return %arg0, %c0_i32 : i32, i32
  }
  func.func @transform_2(%arg0: i32) -> (i32, i32) {
    %c0_i32 = arith.constant 0 : i32
    %c0_i32_0 = arith.constant 0 : i32
    %c0_i32_1 = arith.constant 0 : i32
    return %c0_i32, %c0_i32_0 : i32, i32
  }
  func.func @transform_3(%arg0: i32) -> (i32, i32) {
    %c0_i32 = arith.constant 0 : i32
    %c0_i32_0 = arith.constant 0 : i32
    %c0_i32_1 = arith.constant 0 : i32
    return %c0_i32, %c0_i32_0 : i32, i32
  }
  func.func @transform_4(%arg0: i32) -> (i32, i32) {
    %c0_i32 = arith.constant 0 : i32
    %c0_i32_0 = arith.constant 0 : i32
    %c0_i32_1 = arith.constant 0 : i32
    return %c0_i32, %c0_i32_0 : i32, i32
  }
  func.func @transform_5(%arg0: i32) -> (i32, i32) {
    %c0_i32 = arith.constant 0 : i32
    %c0_i32_0 = arith.constant 0 : i32
    %c0_i32_1 = arith.constant 0 : i32
    return %c0_i32, %c0_i32_0 : i32, i32
  }
  func.func @transform_6(%arg0: i32) -> (i32, i32) {
    %c0_i32 = arith.constant 0 : i32
    %c0_i32_0 = arith.constant 0 : i32
    %c0_i32_1 = arith.constant 0 : i32
    return %c0_i32, %c0_i32_0 : i32, i32
  }
  func.func @transform_7(%arg0: i32) -> (i32, i32) {
    %c0_i32 = arith.constant 0 : i32
    %c0_i32_0 = arith.constant 0 : i32
    %c0_i32_1 = arith.constant 0 : i32
    return %c0_i32, %c0_i32_0 : i32, i32
  }
  func.func @transform_8(%arg0: i32) -> (i32, i32) {
    %c0_i32 = arith.constant 0 : i32
    %c0_i32_0 = arith.constant 0 : i32
    %c0_i32_1 = arith.constant 0 : i32
    return %c0_i32, %c0_i32_0 : i32, i32
  }
  func.func @transform_9(%arg0: i32) -> (i32, i32) {
    %c0_i32 = arith.constant 0 : i32
    %c0_i32_0 = arith.constant 0 : i32
    %c0_i32_1 = arith.constant 0 : i32
    return %c0_i32, %c0_i32_0 : i32, i32
  }
  func.func @transform_10(%arg0: i32) -> (i32, i32) {
    %c0_i32 = arith.constant 0 : i32
    %c0_i32_0 = arith.constant 0 : i32
    return %arg0, %c0_i32 : i32, i32
  }
  func.func @transform_11(%arg0: i32) -> (i32, i32) {
    %c0_i32 = arith.constant 0 : i32
    %c0_i32_0 = arith.constant 0 : i32
    return %arg0, %c0_i32 : i32, i32
  }
}

</mosaic_0001>

<llo_original>
// kernel: _lambda_.1
$region0: #{_lambda_.1}
  #allocation0 [shape = 'u32[]', space=smem, size = 0x4, offset = 0x4, fixed_abs, tag = 'smem constant byte address 0x4 - core index']
  #allocation1 [shape = 'u32[144,128]{1,0:T(1,128)}', space=vmem, size = 0x12000, scoped, tag = 'internal scratch']
  %s0 = inlined_call_operand.vmem [shape: f32[8,16], index: 0, kind: input, shape index: {}]
  %s1 = inlined_call_operand.vmem [shape: f32[8,128], index: 1, kind: input, shape index: {}, may-alias: {1,11}]
  %s2 = inlined_call_operand.vmem [shape: bf16[16,128], index: 2, kind: input, shape index: {}]
  %s3 = inlined_call_operand.vmem [shape: f32[1,128], index: 3, kind: input, shape index: {}]
  %s4 = inlined_call_operand.vmem [shape: bf16[128,384], index: 4, kind: input, shape index: {}]
  %s5 = inlined_call_operand.vmem [shape: bf16[128,384], index: 5, kind: input, shape index: {}]
  %s6 = inlined_call_operand.vmem [shape: f32[1,384], index: 6, kind: input, shape index: {}]
  %s7 = inlined_call_operand.vmem [shape: f32[1,384], index: 7, kind: input, shape index: {}]
  %s8 = inlined_call_operand.vmem [shape: bf16[128,128], index: 8, kind: input, shape index: {}]
  %s9 = inlined_call_operand.vmem [shape: f32[1,128], index: 9, kind: input, shape index: {}]
  %s10 = inlined_call_operand.vmem [shape: f32[8,128], index: 10, kind: output, shape index: {0}]
  %s11 = inlined_call_operand.vmem [shape: f32[8,128], index: 11, kind: output, shape index: {1}, may-alias: {1,11}]
  %12 = xla_tuple %s10, %s11
  %s13 = sld [smem:[#allocation0]]
  $region58: #{_lambda_.1} parent=0
    _
  %s15 = ssub.s32 1, %s13
  %s16 = scalar_select 0, %s15, %s13
  // Predicated region
  $region2: #{_lambda_.1} parent=0 // pred_check
    _
  $region3: #{_lambda_.1} parent=0 // pred_check_branch
    %18 = sbr.rel (0) target = $region5
  $region4: #{_lambda_.1} parent=0 // pred_region
    _
  $region5: #{_lambda_.1} parent=0 // pred_fallthru
    _
  // Predicated region
  $region6: #{_lambda_.1} parent=0 // pred_check
    _
  $region7: #{_lambda_.1} parent=0 // pred_check_branch
    %20 = sbr.rel (0) target = $region9
  $region8: #{_lambda_.1} parent=0 // pred_region
    _
  $region9: #{_lambda_.1} parent=0 // pred_fallthru
    _
  // Predicated region
  $region10: #{_lambda_.1} parent=0 // pred_check
    _
  $region11: #{_lambda_.1} parent=0 // pred_check_branch
    %22 = sbr.rel (0) target = $region13
  $region12: #{_lambda_.1} parent=0 // pred_region
    _
  $region13: #{_lambda_.1} parent=0 // pred_fallthru
    _
  // Predicated region
  $region14: #{_lambda_.1} parent=0 // pred_check
    _
  $region15: #{_lambda_.1} parent=0 // pred_check_branch
    %24 = sbr.rel (0) target = $region17
  $region16: #{_lambda_.1} parent=0 // pred_region
    _
  $region17: #{_lambda_.1} parent=0 // pred_fallthru
    _
  // Predicated region
  $region18: #{_lambda_.1} parent=0 // pred_check
    _
  $region19: #{_lambda_.1} parent=0 // pred_check_branch
    %26 = sbr.rel (0) target = $region21
  $region20: #{_lambda_.1} parent=0 // pred_region
    _
  $region21: #{_lambda_.1} parent=0 // pred_fallthru
    _
  // Predicated region
  $region22: #{_lambda_.1} parent=0 // pred_check
    _
  $region23: #{_lambda_.1} parent=0 // pred_check_branch
    %28 = sbr.rel (0) target = $region25
  $region24: #{_lambda_.1} parent=0 // pred_region
    _
  $region25: #{_lambda_.1} parent=0 // pred_fallthru
    _
  // Predicated region
  $region26: #{_lambda_.1} parent=0 // pred_check
    _
  $region27: #{_lambda_.1} parent=0 // pred_check_branch
    %30 = sbr.rel (0) target = $region29
  $region28: #{_lambda_.1} parent=0 // pred_region
    _
  $region29: #{_lambda_.1} parent=0 // pred_fallthru
    _
  // Predicated region
  $region30: #{_lambda_.1} parent=0 // pred_check
    _
  $region31: #{_lambda_.1} parent=0 // pred_check_branch
    %32 = sbr.rel (0) target = $region33
  $region32: #{_lambda_.1} parent=0 // pred_region
    _
  $region33: #{_lambda_.1} parent=0 // pred_fallthru
    _
  // Predicated region
  $region34: #{_lambda_.1} parent=0 // pred_check
    _
  $region35: #{_lambda_.1} parent=0 // pred_check_branch
    %34 = sbr.rel (0) target = $region37
  $region36: #{_lambda_.1} parent=0 // pred_region
    _
  $region37: #{_lambda_.1} parent=0 // pred_fallthru
    _
  // Predicated region
  $region38: #{_lambda_.1} parent=0 // pred_check
    _
  $region39: #{_lambda_.1} parent=0 // pred_check_branch
    %36 = sbr.rel (0) target = $region41
  $region40: #{_lambda_.1} parent=0 // pred_region
    _
  $region41: #{_lambda_.1} parent=0 // pred_fallthru
    _
  %v38 = vld [vmem:[%s0] sm:$0xff]
  %v39 = vld [vmem:[%s1] sm:$0xff]
  %v40 = vld [vmem:[%s2] sm:$0xf]
  %v41 = vld [vmem:[%s2 + $0x4] sm:$0xf]
  %v42 = vld [vmem:[%s3] sm:$0x1]
  %v43 = vld [vmem:[%s4] sm:$0xff]
  %v44 = vld [vmem:[%s4 + $0x8] sm:$0xf]
  %v45 = vld [vmem:[%s4 + $0xc] sm:$0xff]
  %v46 = vld [vmem:[%s4 + $0x14] sm:$0xf]
  %v47 = vld [vmem:[%s4 + $0x18] sm:$0xff]
  %v48 = vld [vmem:[%s4 + $0x20] sm:$0xf]
  %v49 = vld [vmem:[%s4 + $0x24] sm:$0xff]
  %v50 = vld [vmem:[%s4 + $0x2c] sm:$0xf]
  %v51 = vld [vmem:[%s4 + $0x30] sm:$0xff]
  %v52 = vld [vmem:[%s4 + $0x38] sm:$0xf]
  %v53 = vld [vmem:[%s4 + $0x3c] sm:$0xff]
  %v54 = vld [vmem:[%s4 + $0x44] sm:$0xf]
  %v55 = vld [vmem:[%s4 + $0x48] sm:$0xff]
  %v56 = vld [vmem:[%s4 + $0x50] sm:$0xf]
  %v57 = vld [vmem:[%s4 + $0x54] sm:$0xff]
  %v58 = vld [vmem:[%s4 + $0x5c] sm:$0xf]
  %v59 = vld [vmem:[%s4 + $0x60] sm:$0xff]
  %v60 = vld [vmem:[%s4 + $0x68] sm:$0xf]
  %v61 = vld [vmem:[%s4 + $0x6c] sm:$0xff]
  %v62 = vld [vmem:[%s4 + $0x74] sm:$0xf]
  %v63 = vld [vmem:[%s4 + $0x78] sm:$0xff]
  %v64 = vld [vmem:[%s4 + $0x80] sm:$0xf]
  %v65 = vld [vmem:[%s4 + $0x84] sm:$0xff]
  %v66 = vld [vmem:[%s4 + $0x8c] sm:$0xf]
  %v67 = vld [vmem:[%s4 + $0x90] sm:$0xff]
  %v68 = vld [vmem:[%s4 + $0x98] sm:$0xf]
  %v69 = vld [vmem:[%s4 + $0x9c] sm:$0xff]
  %v70 = vld [vmem:[%s4 + $0xa4] sm:$0xf]
  %v71 = vld [vmem:[%s4 + $0xa8] sm:$0xff]
  %v72 = vld [vmem:[%s4 + $0xb0] sm:$0xf]
  %v73 = vld [vmem:[%s4 + $0xb4] sm:$0xff]
  %v74 = vld [vmem:[%s4 + $0xbc] sm:$0xf]
  %v75 = vld [vmem:[%s5] sm:$0xff]
  %v76 = vld [vmem:[%s5 + $0x8] sm:$0xf]
  %v77 = vld [vmem:[%s5 + $0xc] sm:$0xff]
  %v78 = vld [vmem:[%s5 + $0x14] sm:$0xf]
  %v79 = vld [vmem:[%s5 + $0x18] sm:$0xff]
  %v80 = vld [vmem:[%s5 + $0x20] sm:$0xf]
  %v81 = vld [vmem:[%s5 + $0x24] sm:$0xff]
  %v82 = vld [vmem:[%s5 + $0x2c] sm:$0xf]
  %v83 = vld [vmem:[%s5 + $0x30] sm:$0xff]
  %v84 = vld [vmem:[%s5 + $0x38] sm:$0xf]
  %v85 = vld [vmem:[%s5 + $0x3c] sm:$0xff]
  %v86 = vld [vmem:[%s5 + $0x44] sm:$0xf]
  %v87 = vld [vmem:[%s5 + $0x48] sm:$0xff]
  %v88 = vld [vmem:[%s5 + $0x50] sm:$0xf]
  %v89 = vld [vmem:[%s5 + $0x54] sm:$0xff]
  %v90 = vld [vmem:[%s5 + $0x5c] sm:$0xf]
  %v91 = vld [vmem:[%s5 + $0x60] sm:$0xff]
  %v92 = vld [vmem:[%s5 + $0x68] sm:$0xf]
  %v93 = vld [vmem:[%s5 + $0x6c] sm:$0xff]
  %v94 = vld [vmem:[%s5 + $0x74] sm:$0xf]
  %v95 = vld [vmem:[%s5 + $0x78] sm:$0xff]
  %v96 = vld [vmem:[%s5 + $0x80] sm:$0xf]
  %v97 = vld [vmem:[%s5 + $0x84] sm:$0xff]
  %v98 = vld [vmem:[%s5 + $0x8c] sm:$0xf]
  %v99 = vld [vmem:[%s5 + $0x90] sm:$0xff]
  %v100 = vld [vmem:[%s5 + $0x98] sm:$0xf]
  %v101 = vld [vmem:[%s5 + $0x9c] sm:$0xff]
  %v102 = vld [vmem:[%s5 + $0xa4] sm:$0xf]
  %v103 = vld [vmem:[%s5 + $0xa8] sm:$0xff]
  %v104 = vld [vmem:[%s5 + $0xb0] sm:$0xf]
  %v105 = vld [vmem:[%s5 + $0xb4] sm:$0xff]
  %v106 = vld [vmem:[%s5 + $0xbc] sm:$0xf]
  %v107 = vld [vmem:[%s6] sm:$0x7]
  %v108 = vld [vmem:[%s7] sm:$0x7]
  %v109 = vld [vmem:[%s8] sm:$0xf]
  %v110 = vld [vmem:[%s8 + $0x4] sm:$0xf]
  %v111 = vld [vmem:[%s8 + $0x8] sm:$0xf]
  %v112 = vld [vmem:[%s8 + $0xc] sm:$0xf]
  %v113 = vld [vmem:[%s8 + $0x10] sm:$0xf]
  %v114 = vld [vmem:[%s8 + $0x14] sm:$0xf]
  %v115 = vld [vmem:[%s8 + $0x18] sm:$0xf]
  %v116 = vld [vmem:[%s8 + $0x1c] sm:$0xf]
  %v117 = vld [vmem:[%s8 + $0x20] sm:$0xf]
  %v118 = vld [vmem:[%s8 + $0x24] sm:$0xf]
  %v119 = vld [vmem:[%s8 + $0x28] sm:$0xf]
  %v120 = vld [vmem:[%s8 + $0x2c] sm:$0xf]
  %v121 = vld [vmem:[%s8 + $0x30] sm:$0xf]
  %v122 = vld [vmem:[%s8 + $0x34] sm:$0xf]
  %v123 = vld [vmem:[%s8 + $0x38] sm:$0xf]
  %v124 = vld [vmem:[%s8 + $0x3c] sm:$0xf]
  %v125 = vld [vmem:[%s9] sm:$0x1]
  %v126 = vpack.c.bf16 %v38, %v38
  %v128 = vlaneseq
  %v129 = vshrl.u32 %v128, 7
  %v130 = vsub.s32 0, %v129
  %v131 = vrot.slane %v42, %v130
  %v135 = vunpack.c.l.b16 %v40
  %v136 = vunpack.c.l.b16 %v41
  %v137 = vpack.c.b16 %v136, %v135
  %vm139 = vcmask 130048
  %v141 = vsel %vm139, %v126, 0
  %143 = vmatprep.subr.bf16.mxu0 0
  %144 = vmatpush1.bf16.msra.mxu0 %v137
  %145 = vmatprep.subr.bf16.mxu0 0
  %146 = vmatpush1.bf16.msra.mxu0 0
  %147 = vmatprep.subr.bf16.mxu0 0
  %148 = vmatpush1.bf16.msra.mxu0 0
  %149 = vmatprep.subr.bf16.mxu0 0
  %150 = vmatpush1.bf16.msra.mxu0 0
  %151 = vmatprep.subr.bf16.mxu0 0
  %152 = vmatpush1.bf16.msra.mxu0 0
  %153 = vmatprep.subr.bf16.mxu0 0
  %154 = vmatpush1.bf16.msra.mxu0 0
  %155 = vmatprep.subr.bf16.mxu0 0
  %156 = vmatpush1.bf16.msra.mxu0 0
  %157 = vmatprep.subr.bf16.mxu0 0
  %158 = vmatpush1.bf16.msra.mxu0 0
  %159 = vmatprep.subr.bf16.mxu0 0
  %160 = vmatpush1.bf16.msra.mxu0 0
  %161 = vmatprep.subr.bf16.mxu0 0
  %162 = vmatpush1.bf16.msra.mxu0 0
  %163 = vmatprep.subr.bf16.mxu0 0
  %164 = vmatpush1.bf16.msra.mxu0 0
  %165 = vmatprep.subr.bf16.mxu0 0
  %166 = vmatpush1.bf16.msra.mxu0 0
  %167 = vmatprep.subr.bf16.mxu0 0
  %168 = vmatpush1.bf16.msra.mxu0 0
  %169 = vmatprep.subr.bf16.mxu0 0
  %170 = vmatpush1.bf16.msra.mxu0 0
  %171 = vmatprep.subr.bf16.mxu0 0
  %172 = vmatpush1.bf16.msra.mxu0 0
  %173 = vmatprep.subr.bf16.mxu0 0
  %174 = vmatpush1.bf16.msra.mxu0 0
  %175 = vmatprep.mubr.bf16.mxu0 0
  %176 = vmatmul.mubr.bf16.gmra.mrb[0].mxu0 %v141
  %v177 = vpop.f32.mrb[0].mxu0
  %v178 = vadd.f32 %v131, %v177
  %v179 = vpop.f32.mrb[0].mxu0
  %v180 = vpop.f32.mrb[0].mxu0
  %v181 = vpop.f32.mrb[0].mxu0
  %182 = vdwg.mxu0
  %v183 = vmax.f32 %v178, 0.0
  %v184 = vpack.c.bf16 %v183, %v183
  %v186 = vlaneseq
  %v187 = vshrl.u32 %v186, 7
  %v188 = vsub.s32 0, %v187
  %v189 = vrot.slane %v107, %v188
  %v190 = vlaneseq
  %v191 = vshrl.u32 %v190, 7
  %v192 = vsub.s32 1, %v191
  %v193 = vrot.slane %v107, %v192
  %v194 = vlaneseq
  %v195 = vshrl.u32 %v194, 7
  %v196 = vsub.s32 2, %v195
  %v197 = vrot.slane %v107, %v196
  %v233 = vunpack.c.l.b16 %v43
  %v234 = vunpack.c.h.b16 %v43
  %v235 = vunpack.c.l.b16 %v44
  %v236 = vunpack.c.l.b16 %v45
  %v237 = vunpack.c.h.b16 %v45
  %v238 = vunpack.c.l.b16 %v46
  %v239 = vunpack.c.l.b16 %v47
  %v240 = vunpack.c.h.b16 %v47
  %v241 = vunpack.c.l.b16 %v48
  %v242 = vunpack.c.l.b16 %v49
  %v243 = vunpack.c.h.b16 %v49
  %v244 = vunpack.c.l.b16 %v50
  %v245 = vunpack.c.l.b16 %v51
  %v246 = vunpack.c.h.b16 %v51
  %v247 = vunpack.c.l.b16 %v52
  %v248 = vunpack.c.l.b16 %v53
  %v249 = vunpack.c.h.b16 %v53
  %v250 = vunpack.c.l.b16 %v54
  %v251 = vunpack.c.l.b16 %v55
  %v252 = vunpack.c.h.b16 %v55
  %v253 = vunpack.c.l.b16 %v56
  %v254 = vunpack.c.l.b16 %v57
  %v255 = vunpack.c.h.b16 %v57
  %v256 = vunpack.c.l.b16 %v58
  %v257 = vunpack.c.l.b16 %v59
  %v258 = vunpack.c.h.b16 %v59
  %v259 = vunpack.c.l.b16 %v60
  %v260 = vunpack.c.l.b16 %v61
  %v261 = vunpack.c.h.b16 %v61
  %v262 = vunpack.c.l.b16 %v62
  %v263 = vunpack.c.l.b16 %v63
  %v264 = vunpack.c.h.b16 %v63
  %v265 = vunpack.c.l.b16 %v64
  %v266 = vunpack.c.l.b16 %v65
  %v267 = vunpack.c.h.b16 %v65
  %v268 = vunpack.c.l.b16 %v66
  %v269 = vunpack.c.l.b16 %v67
  %v270 = vunpack.c.h.b16 %v67
  %v271 = vunpack.c.l.b16 %v68
  %v272 = vunpack.c.l.b16 %v69
  %v273 = vunpack.c.h.b16 %v69
  %v274 = vunpack.c.l.b16 %v70
  %v275 = vunpack.c.l.b16 %v71
  %v276 = vunpack.c.h.b16 %v71
  %v277 = vunpack.c.l.b16 %v72
  %v278 = vunpack.c.l.b16 %v73
  %v279 = vunpack.c.h.b16 %v73
  %v280 = vunpack.c.l.b16 %v74
  %v281 = vpack.c.b16 %v236, %v233
  %v282 = vpack.c.b16 %v237, %v234
  %v283 = vpack.c.b16 %v238, %v235
  %v284 = vpack.c.b16 %v242, %v239
  %v285 = vpack.c.b16 %v243, %v240
  %v286 = vpack.c.b16 %v244, %v241
  %v287 = vpack.c.b16 %v248, %v245
  %v288 = vpack.c.b16 %v249, %v246
  %v289 = vpack.c.b16 %v250, %v247
  %v290 = vpack.c.b16 %v254, %v251
  %v291 = vpack.c.b16 %v255, %v252
  %v292 = vpack.c.b16 %v256, %v253
  %v293 = vpack.c.b16 %v260, %v257
  %v294 = vpack.c.b16 %v261, %v258
  %v295 = vpack.c.b16 %v262, %v259
  %v296 = vpack.c.b16 %v266, %v263
  %v297 = vpack.c.b16 %v267, %v264
  %v298 = vpack.c.b16 %v268, %v265
  %v299 = vpack.c.b16 %v272, %v269
  %v300 = vpack.c.b16 %v273, %v270
  %v301 = vpack.c.b16 %v274, %v271
  %v302 = vpack.c.b16 %v278, %v275
  %v303 = vpack.c.b16 %v279, %v276
  %v304 = vpack.c.b16 %v280, %v277
  %329 = vmatprep.subr.bf16.mxu0 %v282
  %330 = vmatpush1.bf16.msra.mxu0 %v281
  %331 = vmatprep.subr.bf16.mxu0 %v285
  %332 = vmatpush1.bf16.msra.mxu0 %v284
  %333 = vmatprep.subr.bf16.mxu0 %v288
  %334 = vmatpush1.bf16.msra.mxu0 %v287
  %335 = vmatprep.subr.bf16.mxu0 %v291
  %336 = vmatpush1.bf16.msra.mxu0 %v290
  %337 = vmatprep.subr.bf16.mxu0 %v294
  %338 = vmatpush1.bf16.msra.mxu0 %v293
  %339 = vmatprep.subr.bf16.mxu0 %v297
  %340 = vmatpush1.bf16.msra.mxu0 %v296
  %341 = vmatprep.subr.bf16.mxu0 %v300
  %342 = vmatpush1.bf16.msra.mxu0 %v299
  %343 = vmatprep.subr.bf16.mxu0 %v303
  %344 = vmatpush1.bf16.msra.mxu0 %v302
  %345 = vmatprep.subr.bf16.mxu0 0
  %346 = vmatpush1.bf16.msra.mxu0 0
  %347 = vmatprep.subr.bf16.mxu0 0
  %348 = vmatpush1.bf16.msra.mxu0 0
  %349 = vmatprep.subr.bf16.mxu0 0
  %350 = vmatpush1.bf16.msra.mxu0 0
  %351 = vmatprep.subr.bf16.mxu0 0
  %352 = vmatpush1.bf16.msra.mxu0 0
  %353 = vmatprep.subr.bf16.mxu0 0
  %354 = vmatpush1.bf16.msra.mxu0 0
  %355 = vmatprep.subr.bf16.mxu0 0
  %356 = vmatpush1.bf16.msra.mxu0 0
  %357 = vmatprep.subr.bf16.mxu0 0
  %358 = vmatpush1.bf16.msra.mxu0 0
  %359 = vmatprep.subr.bf16.mxu0 0
  %360 = vmatpush1.bf16.msra.mxu0 0
  %361 = vmatprep.mubr.bf16.mxu0 0
  %362 = vmatmul.mubr.bf16.gmra.mrb[0].mxu0 %v184
  %v363 = vpop.f32.mrb[0].mxu0
  %v364 = vadd.f32 %v189, %v363
  %v365 = vpop.f32.mrb[0].mxu0
  %v366 = vadd.f32 %v193, %v365
  %v367 = vpop.f32.mrb[0].mxu0
  %v368 = vpop.f32.mrb[0].mxu0
  %369 = vdwg.mxu0
  %370 = vmatprep.subr.bf16.mxu0 0
  %371 = vmatpush1.bf16.msra.mxu0 %v283
  %372 = vmatprep.subr.bf16.mxu0 0
  %373 = vmatpush1.bf16.msra.mxu0 %v286
  %374 = vmatprep.subr.bf16.mxu0 0
  %375 = vmatpush1.bf16.msra.mxu0 %v289
  %376 = vmatprep.subr.bf16.mxu0 0
  %377 = vmatpush1.bf16.msra.mxu0 %v292
  %378 = vmatprep.subr.bf16.mxu0 0
  %379 = vmatpush1.bf16.msra.mxu0 %v295
  %380 = vmatprep.subr.bf16.mxu0 0
  %381 = vmatpush1.bf16.msra.mxu0 %v298
  %382 = vmatprep.subr.bf16.mxu0 0
  %383 = vmatpush1.bf16.msra.mxu0 %v301
  %384 = vmatprep.subr.bf16.mxu0 0
  %385 = vmatpush1.bf16.msra.mxu0 %v304
  %386 = vmatprep.subr.bf16.mxu0 0
  %387 = vmatpush1.bf16.msra.mxu0 0
  %388 = vmatprep.subr.bf16.mxu0 0
  %389 = vmatpush1.bf16.msra.mxu0 0
  %390 = vmatprep.subr.bf16.mxu0 0
  %391 = vmatpush1.bf16.msra.mxu0 0
  %392 = vmatprep.subr.bf16.mxu0 0
  %393 = vmatpush1.bf16.msra.mxu0 0
  %394 = vmatprep.subr.bf16.mxu0 0
  %395 = vmatpush1.bf16.msra.mxu0 0
  %396 = vmatprep.subr.bf16.mxu0 0
  %397 = vmatpush1.bf16.msra.mxu0 0
  %398 = vmatprep.subr.bf16.mxu0 0
  %399 = vmatpush1.bf16.msra.mxu0 0
  %400 = vmatprep.subr.bf16.mxu0 0
  %401 = vmatpush1.bf16.msra.mxu0 0
  %402 = vmatprep.mubr.bf16.mxu0 0
  %403 = vmatmul.mubr.bf16.gmra.mrb[0].mxu0 %v184
  %v404 = vpop.f32.mrb[0].mxu0
  %v405 = vadd.f32 %v197, %v404
  %v406 = vpop.f32.mrb[0].mxu0
  %v407 = vpop.f32.mrb[0].mxu0
  %v408 = vpop.f32.mrb[0].mxu0
  %409 = vdwg.mxu0
  %v410 = vpack.c.bf16 %v39, %v39
  %v412 = vlaneseq
  %v413 = vshrl.u32 %v412, 7
  %v414 = vsub.s32 0, %v413
  %v415 = vrot.slane %v108, %v414
  %v416 = vlaneseq
  %v417 = vshrl.u32 %v416, 7
  %v418 = vsub.s32 1, %v417
  %v419 = vrot.slane %v108, %v418
  %v420 = vlaneseq
  %v421 = vshrl.u32 %v420, 7
  %v422 = vsub.s32 2, %v421
  %v423 = vrot.slane %v108, %v422
  %v459 = vunpack.c.l.b16 %v75
  %v460 = vunpack.c.h.b16 %v75
  %v461 = vunpack.c.l.b16 %v76
  %v462 = vunpack.c.l.b16 %v77
  %v463 = vunpack.c.h.b16 %v77
  %v464 = vunpack.c.l.b16 %v78
  %v465 = vunpack.c.l.b16 %v79
  %v466 = vunpack.c.h.b16 %v79
  %v467 = vunpack.c.l.b16 %v80
  %v468 = vunpack.c.l.b16 %v81
  %v469 = vunpack.c.h.b16 %v81
  %v470 = vunpack.c.l.b16 %v82
  %v471 = vunpack.c.l.b16 %v83
  %v472 = vunpack.c.h.b16 %v83
  %v473 = vunpack.c.l.b16 %v84
  %v474 = vunpack.c.l.b16 %v85
  %v475 = vunpack.c.h.b16 %v85
  %v476 = vunpack.c.l.b16 %v86
  %v477 = vunpack.c.l.b16 %v87
  %v478 = vunpack.c.h.b16 %v87
  %v479 = vunpack.c.l.b16 %v88
  %v480 = vunpack.c.l.b16 %v89
  %v481 = vunpack.c.h.b16 %v89
  %v482 = vunpack.c.l.b16 %v90
  %v483 = vunpack.c.l.b16 %v91
  %v484 = vunpack.c.h.b16 %v91
  %v485 = vunpack.c.l.b16 %v92
  %v486 = vunpack.c.l.b16 %v93
  %v487 = vunpack.c.h.b16 %v93
  %v488 = vunpack.c.l.b16 %v94
  %v489 = vunpack.c.l.b16 %v95
  %v490 = vunpack.c.h.b16 %v95
  %v491 = vunpack.c.l.b16 %v96
  %v492 = vunpack.c.l.b16 %v97
  %v493 = vunpack.c.h.b16 %v97
  %v494 = vunpack.c.l.b16 %v98
  %v495 = vunpack.c.l.b16 %v99
  %v496 = vunpack.c.h.b16 %v99
  %v497 = vunpack.c.l.b16 %v100
  %v498 = vunpack.c.l.b16 %v101
  %v499 = vunpack.c.h.b16 %v101
  %v500 = vunpack.c.l.b16 %v102
  %v501 = vunpack.c.l.b16 %v103
  %v502 = vunpack.c.h.b16 %v103
  %v503 = vunpack.c.l.b16 %v104
  %v504 = vunpack.c.l.b16 %v105
  %v505 = vunpack.c.h.b16 %v105
  %v506 = vunpack.c.l.b16 %v106
  %v507 = vpack.c.b16 %v462, %v459
  %v508 = vpack.c.b16 %v463, %v460
  %v509 = vpack.c.b16 %v464, %v461
  %v510 = vpack.c.b16 %v468, %v465
  %v511 = vpack.c.b16 %v469, %v466
  %v512 = vpack.c.b16 %v470, %v467
  %v513 = vpack.c.b16 %v474, %v471
  %v514 = vpack.c.b16 %v475, %v472
  %v515 = vpack.c.b16 %v476, %v473
  %v516 = vpack.c.b16 %v480, %v477
  %v517 = vpack.c.b16 %v481, %v478
  %v518 = vpack.c.b16 %v482, %v479
  %v519 = vpack.c.b16 %v486, %v483
  %v520 = vpack.c.b16 %v487, %v484
  %v521 = vpack.c.b16 %v488, %v485
  %v522 = vpack.c.b16 %v492, %v489
  %v523 = vpack.c.b16 %v493, %v490
  %v524 = vpack.c.b16 %v494, %v491
  %v525 = vpack.c.b16 %v498, %v495
  %v526 = vpack.c.b16 %v499, %v496
  %v527 = vpack.c.b16 %v500, %v497
  %v528 = vpack.c.b16 %v504, %v501
  %v529 = vpack.c.b16 %v505, %v502
  %v530 = vpack.c.b16 %v506, %v503
  %555 = vmatprep.subr.bf16.mxu0 %v508
  %556 = vmatpush1.bf16.msra.mxu0 %v507
  %557 = vmatprep.subr.bf16.mxu0 %v511
  %558 = vmatpush1.bf16.msra.mxu0 %v510
  %559 = vmatprep.subr.bf16.mxu0 %v514
  %560 = vmatpush1.bf16.msra.mxu0 %v513
  %561 = vmatprep.subr.bf16.mxu0 %v517
  %562 = vmatpush1.bf16.msra.mxu0 %v516
  %563 = vmatprep.subr.bf16.mxu0 %v520
  %564 = vmatpush1.bf16.msra.mxu0 %v519
  %565 = vmatprep.subr.bf16.mxu0 %v523
  %566 = vmatpush1.bf16.msra.mxu0 %v522
  %567 = vmatprep.subr.bf16.mxu0 %v526
  %568 = vmatpush1.bf16.msra.mxu0 %v525
  %569 = vmatprep.subr.bf16.mxu0 %v529
  %570 = vmatpush1.bf16.msra.mxu0 %v528
  %571 = vmatprep.subr.bf16.mxu0 0
  %572 = vmatpush1.bf16.msra.mxu0 0
  %573 = vmatprep.subr.bf16.mxu0 0
  %574 = vmatpush1.bf16.msra.mxu0 0
  %575 = vmatprep.subr.bf16.mxu0 0
  %576 = vmatpush1.bf16.msra.mxu0 0
  %577 = vmatprep.subr.bf16.mxu0 0
  %578 = vmatpush1.bf16.msra.mxu0 0
  %579 = vmatprep.subr.bf16.mxu0 0
  %580 = vmatpush1.bf16.msra.mxu0 0
  %581 = vmatprep.subr.bf16.mxu0 0
  %582 = vmatpush1.bf16.msra.mxu0 0
  %583 = vmatprep.subr.bf16.mxu0 0
  %584 = vmatpush1.bf16.msra.mxu0 0
  %585 = vmatprep.subr.bf16.mxu0 0
  %586 = vmatpush1.bf16.msra.mxu0 0
  %587 = vmatprep.mubr.bf16.mxu0 0
  %588 = vmatmul.mubr.bf16.gmra.mrb[0].mxu0 %v410
  %v589 = vpop.f32.mrb[0].mxu0
  %v590 = vadd.f32 %v415, %v589
  %v591 = vpop.f32.mrb[0].mxu0
  %v592 = vadd.f32 %v419, %v591
  %v593 = vpop.f32.mrb[0].mxu0
  %v594 = vpop.f32.mrb[0].mxu0
  %595 = vdwg.mxu0
  %596 = vmatprep.subr.bf16.mxu0 0
  %597 = vmatpush1.bf16.msra.mxu0 %v509
  %598 = vmatprep.subr.bf16.mxu0 0
  %599 = vmatpush1.bf16.msra.mxu0 %v512
  %600 = vmatprep.subr.bf16.mxu0 0
  %601 = vmatpush1.bf16.msra.mxu0 %v515
  %602 = vmatprep.subr.bf16.mxu0 0
  %603 = vmatpush1.bf16.msra.mxu0 %v518
  %604 = vmatprep.subr.bf16.mxu0 0
  %605 = vmatpush1.bf16.msra.mxu0 %v521
  %606 = vmatprep.subr.bf16.mxu0 0
  %607 = vmatpush1.bf16.msra.mxu0 %v524
  %608 = vmatprep.subr.bf16.mxu0 0
  %609 = vmatpush1.bf16.msra.mxu0 %v527
  %610 = vmatprep.subr.bf16.mxu0 0
  %611 = vmatpush1.bf16.msra.mxu0 %v530
  %612 = vmatprep.subr.bf16.mxu0 0
  %613 = vmatpush1.bf16.msra.mxu0 0
  %614 = vmatprep.subr.bf16.mxu0 0
  %615 = vmatpush1.bf16.msra.mxu0 0
  %616 = vmatprep.subr.bf16.mxu0 0
  %617 = vmatpush1.bf16.msra.mxu0 0
  %618 = vmatprep.subr.bf16.mxu0 0
  %619 = vmatpush1.bf16.msra.mxu0 0
  %620 = vmatprep.subr.bf16.mxu0 0
  %621 = vmatpush1.bf16.msra.mxu0 0
  %622 = vmatprep.subr.bf16.mxu0 0
  %623 = vmatpush1.bf16.msra.mxu0 0
  %624 = vmatprep.subr.bf16.mxu0 0
  %625 = vmatpush1.bf16.msra.mxu0 0
  %626 = vmatprep.subr.bf16.mxu0 0
  %627 = vmatpush1.bf16.msra.mxu0 0
  %628 = vmatprep.mubr.bf16.mxu0 0
  %629 = vmatmul.mubr.bf16.gmra.mrb[0].mxu0 %v410
  %v630 = vpop.f32.mrb[0].mxu0
  %v631 = vadd.f32 %v423, %v630
  %v632 = vpop.f32.mrb[0].mxu0
  %v633 = vpop.f32.mrb[0].mxu0
  %v634 = vpop.f32.mrb[0].mxu0
  %635 = vdwg.mxu0
  %v636 = vadd.f32 %v364, %v590
  %v637 = vxor.u32 %v636, 2147483648
  %v638 = vmul.f32 %v637, 1.442695
  %v639 = vpow.pop %v638
  %v640 = vadd.f32 %v639, 1.0
  %v641 = vrcp.pop %v640
  %v642 = vmul.f32 1.0, %v641
  %v643 = vadd.f32 %v366, %v592
  %v644 = vxor.u32 %v643, 2147483648
  %v645 = vmul.f32 %v644, 1.442695
  %v646 = vpow.pop %v645
  %v647 = vadd.f32 %v646, 1.0
  %v648 = vrcp.pop %v647
  %v649 = vmul.f32 1.0, %v648
  %v650 = vmul.f32 %v642, %v631
  %v651 = vadd.f32 %v405, %v650
  %v652 = vtanh.pop %v651
  %v653 = vsub.f32 1.0, %v649
  %v654 = vmul.f32 %v653, %v652
  %v655 = vmul.f32 %v649, %v39
  %v656 = vadd.f32 %v654, %v655
  %v657 = vpack.c.bf16 %v656, %v656
  %v659 = vlaneseq
  %v660 = vshrl.u32 %v659, 7
  %v661 = vsub.s32 0, %v660
  %v662 = vrot.slane %v125, %v661
  %v680 = vunpack.c.l.b16 %v109
  %v681 = vunpack.c.l.b16 %v110
  %v682 = vunpack.c.l.b16 %v111
  %v683 = vunpack.c.l.b16 %v112
  %v684 = vunpack.c.l.b16 %v113
  %v685 = vunpack.c.l.b16 %v114
  %v686 = vunpack.c.l.b16 %v115
  %v687 = vunpack.c.l.b16 %v116
  %v688 = vunpack.c.l.b16 %v117
  %v689 = vunpack.c.l.b16 %v118
  %v690 = vunpack.c.l.b16 %v119
  %v691 = vunpack.c.l.b16 %v120
  %v692 = vunpack.c.l.b16 %v121
  %v693 = vunpack.c.l.b16 %v122
  %v694 = vunpack.c.l.b16 %v123
  %v695 = vunpack.c.l.b16 %v124
  %v696 = vpack.c.b16 %v681, %v680
  %v697 = vpack.c.b16 %v683, %v682
  %v698 = vpack.c.b16 %v685, %v684
  %v699 = vpack.c.b16 %v687, %v686
  %v700 = vpack.c.b16 %v689, %v688
  %v701 = vpack.c.b16 %v691, %v690
  %v702 = vpack.c.b16 %v693, %v692
  %v703 = vpack.c.b16 %v695, %v694
  %712 = vmatprep.subr.bf16.mxu0 0
  %713 = vmatpush1.bf16.msra.mxu0 %v696
  %714 = vmatprep.subr.bf16.mxu0 0
  %715 = vmatpush1.bf16.msra.mxu0 %v697
  %716 = vmatprep.subr.bf16.mxu0 0
  %717 = vmatpush1.bf16.msra.mxu0 %v698
  %718 = vmatprep.subr.bf16.mxu0 0
  %719 = vmatpush1.bf16.msra.mxu0 %v699
  %720 = vmatprep.subr.bf16.mxu0 0
  %721 = vmatpush1.bf16.msra.mxu0 %v700
  %722 = vmatprep.subr.bf16.mxu0 0
  %723 = vmatpush1.bf16.msra.mxu0 %v701
  %724 = vmatprep.subr.bf16.mxu0 0
  %725 = vmatpush1.bf16.msra.mxu0 %v702
  %726 = vmatprep.subr.bf16.mxu0 0
  %727 = vmatpush1.bf16.msra.mxu0 %v703
  %728 = vmatprep.subr.bf16.mxu0 0
  %729 = vmatpush1.bf16.msra.mxu0 0
  %730 = vmatprep.subr.bf16.mxu0 0
  %731 = vmatpush1.bf16.msra.mxu0 0
  %732 = vmatprep.subr.bf16.mxu0 0
  %733 = vmatpush1.bf16.msra.mxu0 0
  %734 = vmatprep.subr.bf16.mxu0 0
  %735 = vmatpush1.bf16.msra.mxu0 0
  %736 = vmatprep.subr.bf16.mxu0 0
  %737 = vmatpush1.bf16.msra.mxu0 0
  %738 = vmatprep.subr.bf16.mxu0 0
  %739 = vmatpush1.bf16.msra.mxu0 0
  %740 = vmatprep.subr.bf16.mxu0 0
  %741 = vmatpush1.bf16.msra.mxu0 0
  %742 = vmatprep.subr.bf16.mxu0 0
  %743 = vmatpush1.bf16.msra.mxu0 0
  %744 = vmatprep.mubr.bf16.mxu0 0
  %745 = vmatmul.mubr.bf16.gmra.mrb[0].mxu0 %v657
  %v746 = vpop.f32.mrb[0].mxu0
  %v747 = vadd.f32 %v662, %v746
  %v748 = vpop.f32.mrb[0].mxu0
  %v749 = vpop.f32.mrb[0].mxu0
  %v750 = vpop.f32.mrb[0].mxu0
  %751 = vdwg.mxu0
  %752 = vst [vmem:[%s11] sm:$0xff] %v656
  %753 = vst [vmem:[%s10] sm:$0xff] %v747
  // Predicated region
  $region42: #{_lambda_.1} parent=0 // pred_check
    _
  $region43: #{_lambda_.1} parent=0 // pred_check_branch
    %755 = sbr.rel (0) target = $region45
  $region44: #{_lambda_.1} parent=0 // pred_region
    _
  $region45: #{_lambda_.1} parent=0 // pred_fallthru
    _
  // Predicated region
  $region46: #{_lambda_.1} parent=0 // pred_check
    _
  $region47: #{_lambda_.1} parent=0 // pred_check_branch
    %757 = sbr.rel (0) target = $region49
  $region48: #{_lambda_.1} parent=0 // pred_region
    _
  $region49: #{_lambda_.1} parent=0 // pred_fallthru
    _
  // Predicated region
  $region50: #{_lambda_.1} parent=0 // pred_check
    _
  $region51: #{_lambda_.1} parent=0 // pred_check_branch
    %759 = sbr.rel (0) target = $region53
  $region52: #{_lambda_.1} parent=0 // pred_region
    _
  $region53: #{_lambda_.1} parent=0 // pred_fallthru
    _
  // Predicated region
  $region54: #{_lambda_.1} parent=0 // pred_check
    _
  $region55: #{_lambda_.1} parent=0 // pred_check_branch
    %761 = sbr.rel (0) target = $region57
  $region56: #{_lambda_.1} parent=0 // pred_region
    _
  $region57: #{_lambda_.1} parent=0 // pred_fallthru
    _

</llo_original>
